<compile_context>
chip_gen: v7x
topology: tpu7x:2x2x1
jax: 0.10.0
libtpu: 0.0.40
codegen_flags: <defaults>
</compile_context>

<pallas_src>
import functools

import jax
import jax.numpy as jnp
from jax.experimental import pallas as pl
from jax.experimental.pallas import tpu as pltpu


def _vmem_capacity_bytes():
    """Physical per-core VMEM, with a conservative (v7x) fallback."""
    try:
        info = pltpu.get_tpu_info()
        cap = getattr(info, "vmem_capacity_bytes", None)
        if cap:
            return int(cap)
    except Exception:
        pass
    return 64 << 20


def _pool_kernel(x_ref, sum_ref, max_ref, *, hw_total, tile_hw, need_mask):
    """Streaming relu + (sum, max) pool over the HW axis.

    x_ref:   (bt, tc, tile_hw) input block.
    sum_ref: (bt, tc) f32 running sum  (output ref, resident across HW axis).
    max_ref: (bt, tc) f32 running max  (output ref, resident across HW axis).
    """
    hw_step = pl.program_id(2)
    last = pl.num_programs(2) - 1

    @pl.when(hw_step == 0)
    def _init():
        sum_ref[...] = jnp.zeros_like(sum_ref)
        # relu(x) >= 0, so 0 is a valid identity for the running max.
        max_ref[...] = jnp.zeros_like(max_ref)

    # ReLU in the input dtype (bf16-native on v6e/v7x); widen only for the sum.
    x = jnp.maximum(x_ref[...], 0)

    def _accumulate(xv):
        sum_ref[...] += jnp.sum(xv.astype(jnp.float32), axis=-1)
        max_ref[...] = jnp.maximum(max_ref[...],
                                   jnp.max(xv, axis=-1).astype(jnp.float32))

    if need_mask:
        # Only the final HW block carries padded lanes: keep the steady-state
        # loop mask-free and pay for the iota/compare/select exactly once.
        @pl.when(hw_step != last)
        def _steady():
            _accumulate(x)

        @pl.when(hw_step == last)
        def _tail():
            idx = jax.lax.broadcasted_iota(jnp.int32, x.shape, dimension=2)
            valid = (hw_step * tile_hw + idx) < hw_total
            _accumulate(jnp.where(valid, x, 0))
    else:
        _accumulate(x)


def _mlp_kernel(sum_ref, max_ref, w1t_ref, w2t_ref, o_ref, *, inv_hw):
    """Fused two-branch fc1 -> relu -> fc2 -> (+) -> sigmoid epilogue."""
    avg_p = sum_ref[...] * inv_hw                      # (be, C) f32
    max_p = max_ref[...]                               # (be, C) f32
    p = jnp.concatenate([avg_p, max_p], axis=0)        # (2*be, C)
    w1t = w1t_ref[...].astype(jnp.float32)             # (C, hidden)
    w2t = w2t_ref[...].astype(jnp.float32)             # (hidden, C)
    h = jnp.maximum(jnp.dot(p, w1t, preferred_element_type=jnp.float32), 0.0)
    y = jnp.dot(h, w2t, preferred_element_type=jnp.float32)
    be = avg_p.shape[0]
    o_ref[...] = jax.nn.sigmoid(y[:be] + y[be:]).astype(o_ref.dtype)


def channel_attention(x, w1, w2, *, target_block_bytes=12 << 20):
    """x: (B, C, H, W). w1: (C//16, C). w2: (C, C//16).
    Returns (B, C, 1, 1) sigmoid channel-attention map (matches PyTorch
    ChannelAttention.forward)."""
    B, C, H, W = x.shape
    HW = H * W
    hidden = w1.shape[0]
    dtype_bytes = x.dtype.itemsize
    x3 = x.reshape(B, C, HW)

    # Pre-transpose weights so neither kernel does an in-kernel .T
    w1t = jnp.asarray(w1).T                     # (C, hidden)
    w2t = jnp.asarray(w2).T                     # (hidden, C)

    cap = _vmem_capacity_bytes()

    # ---- Stage 1: streaming relu + (sum, max) pool -------------------------
    # Batch tile: 8-row chunks ((8,128) rule); a partial tail block is handled
    # by the cdiv grid + masked writeback, so odd B never blows up VMEM.
    bt = 8 if B >= 8 else B
    nb = pl.cdiv(B, bt)

    # Channel groups: ensure >= 2 parallel grid steps (v7x has 2 TensorCores)
    # when the batch axis alone can't, and split further if a minimal block
    # would not fit the VMEM budget. Output blocks need tc % 128 == 0 (or
    # tc == C), so only 128-aligned splits are considered.
    want_groups = 1 if nb >= 2 else 2
    nc, tc = 1, C
    for g in (1, 2, 4, 8, 16, 32):
        if C % g != 0 or (g > 1 and (C // g) % 128 != 0):
            continue
        nc, tc = g, C // g
        fits = 2 * bt * (C // g) * 128 * dtype_bytes <= cap // 2
        if g >= want_groups and fits:
            break

    # HW tile: multiple of 128, sized so one x block is ~target_block_bytes
    # (2x double buffering then uses <= half the generation's physical VMEM).
    tgt = min(int(target_block_bytes), cap // 4)
    hw_padded = -(-HW // 128) * 128
    lanes = max(128, (tgt // (bt * tc * dtype_bytes)) // 128 * 128)
    tile_hw = min(lanes, hw_padded)
    hw_steps = -(-HW // tile_hw)
    need_mask = (HW % tile_hw) != 0

    block_bytes = bt * tc * tile_hw * dtype_bytes
    vmem_limit = int(min(max(2 * block_bytes + (8 << 20), 32 << 20),
                         cap - (8 << 20)))

    pool_kernel = functools.partial(
        _pool_kernel, hw_total=HW, tile_hw=tile_hw, need_mask=need_mask)

    pool_cost = pl.CostEstimate(
        flops=int(3 * B * C * HW),
        transcendentals=0,
        bytes_accessed=int(B * C * HW * dtype_bytes + 2 * B * C * 4),
    )

    sum_pool, max_pool = pl.pallas_call(
        pool_kernel,
        out_shape=(jax.ShapeDtypeStruct((B, C), jnp.float32),
                   jax.ShapeDtypeStruct((B, C), jnp.float32)),
        grid_spec=pltpu.PrefetchScalarGridSpec(
            num_scalar_prefetch=0,
            grid=(nb, nc, hw_steps),
            in_specs=[
                pl.BlockSpec((bt, tc, tile_hw), lambda i, j, k: (i, j, k)),
            ],
            out_specs=[
                pl.BlockSpec((bt, tc), lambda i, j, k: (i, j)),
                pl.BlockSpec((bt, tc), lambda i, j, k: (i, j)),
            ],
        ),
        compiler_params=pltpu.CompilerParams(
            dimension_semantics=("parallel", "parallel", "arbitrary"),
            vmem_limit_bytes=vmem_limit,
        ),
        cost_estimate=pool_cost,
    )(x3)

    # ---- Stage 2: tiny fused MLP + sigmoid epilogue -------------------------
    be = min(B, 128)
    mlp_kernel = functools.partial(_mlp_kernel, inv_hw=1.0 / HW)

    out = pl.pallas_call(
        mlp_kernel,
        out_shape=jax.ShapeDtypeStruct((B, C), x.dtype),
        grid_spec=pltpu.PrefetchScalarGridSpec(
            num_scalar_prefetch=0,
            grid=(pl.cdiv(B, be),),
            in_specs=[
                pl.BlockSpec((be, C), lambda i: (i, 0)),
                pl.BlockSpec((be, C), lambda i: (i, 0)),
                pl.BlockSpec(w1t.shape, lambda i: (0, 0)),   # resident weights
                pl.BlockSpec(w2t.shape, lambda i: (0, 0)),   # resident weights
            ],
            out_specs=pl.BlockSpec((be, C), lambda i: (i, 0)),
        ),
        compiler_params=pltpu.CompilerParams(
            dimension_semantics=("parallel",),
        ),
        cost_estimate=pl.CostEstimate(
            flops=int(8 * B * C * hidden),
            transcendentals=int(B * C),
            bytes_accessed=int(2 * B * C * 4 + (w1t.size + w2t.size) * 4
                               + B * C * dtype_bytes),
        ),
    )(sum_pool, max_pool, w1t, w2t)

    return out.reshape(B, C, 1, 1)


def reference(x, w1, w2):
    # Pure-JAX reference mirroring the PyTorch module.
    xr = jnp.maximum(x, 0.0)
    avg_p = jnp.mean(xr, axis=(2, 3))           # (B, C)
    max_p = jnp.max(xr, axis=(2, 3))            # (B, C)

    def mlp(p):
        h = jnp.maximum(p @ w1.T, 0.0)
        return h @ w2.T

    return jax.nn.sigmoid(mlp(avg_p) + mlp(max_p))[:, :, None, None]


if __name__ == "__main__":
    key = jax.random.PRNGKey(0)
    kx, k1, k2 = jax.random.split(key, 3)

    # in_planes must be >= 16 (module hardcodes //16); keep shapes small.
    B, C, H, W = 2, 32, 16, 16
    hidden = C // 16  # = 2

    x = jax.random.normal(kx, (B, C, H, W), dtype=jnp.float32)
    # Conv2d(in, out, 1, bias=False) weights: (out, in, 1, 1) -> squeeze to (out, in)
    w1 = jax.random.normal(k1, (hidden, C), dtype=jnp.float32) * (1.0 / jnp.sqrt(C))
    w2 = jax.random.normal(k2, (C, hidden), dtype=jnp.float32) * (1.0 / jnp.sqrt(hidden))

    out = channel_attention(x, w1, w2)
    jax.block_until_ready(out)

    ref = reference(x, w1, w2)
    assert out.shape == (B, C, 1, 1)
    assert jnp.allclose(out, ref, atol=1e-5, rtol=1e-5), "mismatch vs reference"

    print("KERNEL_OK")
</pallas_src>

<mosaic_0001>
module attributes {stable_mosaic.version = 11 : i64} {
  func.func @_pool_kernel(%arg0: i32, %arg1: i32, %arg2: i32, %arg3: memref<2x32x256xf32, #tpu.memory_space<vmem>>, %arg4: memref<2x32xf32, #tpu.memory_space<vmem>>, %arg5: memref<2x32xf32, #tpu.memory_space<vmem>>) attributes {dimension_semantics = [#tpu.dimension_semantics<parallel>, #tpu.dimension_semantics<parallel>, #tpu.dimension_semantics<arbitrary>], iteration_bounds = array<i64: 1, 1, 1>, scalar_prefetch = 0 : i64, scratch_operands = 0 : i64, tpu.core_type = #tpu.core_type<tc>, window_params = [{transform_indices = @transform_0, window_bounds = array<i64: 2, 32, 256>}, {transform_indices = @transform_1, window_bounds = array<i64: 2, 32>}, {transform_indices = @transform_2, window_bounds = array<i64: 2, 32>}]} {
    %c0_i32 = arith.constant 0 : i32
    %0 = arith.cmpi eq, %arg2, %c0_i32 : i32
    %1 = arith.extui %0 : i1 to i32
    %c0_i32_0 = arith.constant 0 : i32
    %2 = arith.cmpi ne, %1, %c0_i32_0 : i32
    scf.if %2 {
      %cst_13 = arith.constant 0.000000e+00 : f32
      %14 = vector.broadcast %cst_13 : f32 to vector<2x32xf32>
      %c0_14 = arith.constant 0 : index
      %c0_15 = arith.constant 0 : index
      %15 = vector.load %arg4[%c0_14, %c0_15] : memref<2x32xf32, #tpu.memory_space<vmem>>, vector<2x32xf32>
      tpu.vector_store %arg4[%c0_14, %c0_15], %14 {strides = array<i32>} : memref<2x32xf32, #tpu.memory_space<vmem>>, vector<2x32xf32>,
      %cst_16 = arith.constant 0.000000e+00 : f32
      %16 = vector.broadcast %cst_16 : f32 to vector<2x32xf32>
      %c0_17 = arith.constant 0 : index
      %c0_18 = arith.constant 0 : index
      %17 = vector.load %arg5[%c0_17, %c0_18] : memref<2x32xf32, #tpu.memory_space<vmem>>, vector<2x32xf32>
      tpu.vector_store %arg5[%c0_17, %c0_18], %16 {strides = array<i32>} : memref<2x32xf32, #tpu.memory_space<vmem>>, vector<2x32xf32>,
    } else {
    }
    %c0 = arith.constant 0 : index
    %c0_1 = arith.constant 0 : index
    %c0_2 = arith.constant 0 : index
    %3 = vector.load %arg3[%c0, %c0_1, %c0_2] : memref<2x32x256xf32, #tpu.memory_space<vmem>>, vector<2x32x256xf32>
    %cst = arith.constant 0.000000e+00 : f32
    %4 = vector.broadcast %cst : f32 to vector<2x32x256xf32>
    %5 = arith.maximumf %3, %4 : vector<2x32x256xf32>
    %c0_3 = arith.constant 0 : index
    %c0_4 = arith.constant 0 : index
    %6 = vector.load %arg4[%c0_3, %c0_4] : memref<2x32xf32, #tpu.memory_space<vmem>>, vector<2x32xf32>
    %cst_5 = arith.constant dense<0.000000e+00> : vector<2x32xf32>
    %7 = vector.multi_reduction <add>, %5, %cst_5 [2] : vector<2x32x256xf32> to vector<2x32xf32>
    %8 = arith.addf %6, %7 : vector<2x32xf32>
    %c0_6 = arith.constant 0 : index
    %c0_7 = arith.constant 0 : index
    %9 = vector.load %arg4[%c0_6, %c0_7] : memref<2x32xf32, #tpu.memory_space<vmem>>, vector<2x32xf32>
    tpu.vector_store %arg4[%c0_6, %c0_7], %8 {strides = array<i32>} : memref<2x32xf32, #tpu.memory_space<vmem>>, vector<2x32xf32>,
    %c0_8 = arith.constant 0 : index
    %c0_9 = arith.constant 0 : index
    %10 = vector.load %arg5[%c0_8, %c0_9] : memref<2x32xf32, #tpu.memory_space<vmem>>, vector<2x32xf32>
    %cst_10 = arith.constant dense<0xFF800000> : vector<2x32xf32>
    %11 = vector.multi_reduction <maximumf>, %5, %cst_10 [2] : vector<2x32x256xf32> to vector<2x32xf32>
    %12 = arith.maximumf %10, %11 : vector<2x32xf32>
    %c0_11 = arith.constant 0 : index
    %c0_12 = arith.constant 0 : index
    %13 = vector.load %arg5[%c0_11, %c0_12] : memref<2x32xf32, #tpu.memory_space<vmem>>, vector<2x32xf32>
    tpu.vector_store %arg5[%c0_11, %c0_12], %12 {strides = array<i32>} : memref<2x32xf32, #tpu.memory_space<vmem>>, vector<2x32xf32>,
    return
  }
  func.func @transform_0(%arg0: i32, %arg1: i32, %arg2: i32) -> (i32, i32, i32) {
    %c0_i32 = arith.constant 0 : i32
    return %arg0, %arg1, %arg2 : i32, i32, i32
  }
  func.func @transform_1(%arg0: i32, %arg1: i32, %arg2: i32) -> (i32, i32) {
    %c0_i32 = arith.constant 0 : i32
    return %arg0, %arg1 : i32, i32
  }
  func.func @transform_2(%arg0: i32, %arg1: i32, %arg2: i32) -> (i32, i32) {
    %c0_i32 = arith.constant 0 : i32
    return %arg0, %arg1 : i32, i32
  }
}

</mosaic_0001>

<llo_original>
// kernel: tpu_custom_call.1
$region0: #{tpu_custom_call.1}
  #allocation0 [shape = 'u32[]', space=smem, size = 0x4, offset = 0x4, fixed_abs, tag = 'smem constant byte address 0x4 - core index']
  #allocation1 [shape = 'u32[144,128]{1,0:T(1,128)}', space=vmem, size = 0x12000, scoped, tag = 'internal scratch']
  %s0 = inlined_call_operand.hbm [shape: f32[2,32,256], index: 0, kind: input, shape index: {}]
  %s1 = inlined_call_operand.hbm [shape: f32[2,32], index: 1, kind: output, shape index: {0}]
  %s2 = inlined_call_operand.hbm [shape: f32[2,32], index: 2, kind: output, shape index: {1}]
  %3 = xla_tuple %s1, %s2
  %s4 = sld [smem:[#allocation0]]
  $region30: #{tpu_custom_call.1} parent=0
    _
  %s6 = ssub.s32 1, %s4
  %s7 = scalar_select 0, %s6, %s4
  $region1: #{tpu_custom_call.1} parent=0
    #allocation2 [shape = 'u8[65536]{0}', space=vmem, size = 0x10000, scoped, tag = 'input window, operand 0, single buffered']
    #allocation3 [shape = 's32[1]{0}', space=sflag, size = 0x4, scoped, tag = 'scoped memory for tpu_custom_call.1']
    #allocation4 [shape = 's32[1]{0}', space=sflag, size = 0x4, scoped, tag = 'scoped memory for tpu_custom_call.1']
    #allocation5 [shape = 'u8[1024]{0}', space=vmem, size = 0x400, scoped, tag = 'output window, operand 0, single buffered']
    #allocation6 [shape = 'u8[1024]{0}', space=vmem, size = 0x400, scoped, tag = 'output window, operand 1, single buffered']
    #allocation7 [shape = 's32[1]{0}', space=sflag, size = 0x4, scoped, tag = 'scoped memory for tpu_custom_call.1']
    %8 = vsyncpa [#allocation3], 0
    %9 = vsyncpa [#allocation4], 0
    %10 = vsyncpa [#allocation7], 0
    // Predicated region
    $region2: #{tpu_custom_call.1} parent=1 // pred_check
      _
    $region3: #{tpu_custom_call.1} parent=1 // pred_check_branch
      %12 = sbr.rel (0) target = $region5
    $region4: #{tpu_custom_call.1} parent=1 // pred_region
      %s14 = ssub.s32 2048, 2048
      %15 = vsyncadd [#allocation3], %s14
      %s16 = sshll.u32 [#allocation2], 4
      %s17 = int_to_ptr.vmem [resolvable:$true] %s16
      %22 = dma.hbm_to_vmem [thread:$0]  %s0, 2048, %s17, [#allocation3], 256, 256, 16
    $region5: #{tpu_custom_call.1} parent=1 // pred_fallthru
      _
    // Predicated region
    $region6: #{tpu_custom_call.1} parent=1 // pred_check
      _
    $region7: #{tpu_custom_call.1} parent=1 // pred_check_branch
      %24 = sbr.rel (0) target = $region9
    $region8: #{tpu_custom_call.1} parent=1 // pred_region
      %25 = dma.done [#allocation3], 2048
    $region9: #{tpu_custom_call.1} parent=1 // pred_fallthru
      _
    %p26 = scmp.eq.s32.totalorder 0, 0
    // Predicated region
    $region10: #{tpu_custom_call.1} parent=1 // pred_check
      %p27 = pneg %p26
    $region11: #{tpu_custom_call.1} parent=1 // pred_check_branch
      %29 = sbr.rel (%p27) target = $region13
    $region12: #{tpu_custom_call.1} parent=1 // pred_region
      %vm30 = vcmask 254976
      %31 = vst.msk [vmem:[#allocation5] sm:$0x3] %vm30, 0.0
      %32 = vst.msk [vmem:[#allocation6] sm:$0x3] %vm30, 0.0
    $region13: #{tpu_custom_call.1} parent=1 // pred_fallthru
      _
    %v33 = vld [vmem:[#allocation2] sm:$0xff]
    %v34 = vld [vmem:[#allocation2 + $0x8] sm:$0xff]
    %v35 = vld [vmem:[#allocation2 + $0x10] sm:$0xff]
    %v36 = vld [vmem:[#allocation2 + $0x18] sm:$0xff]
    %v37 = vld [vmem:[#allocation2 + $0x20] sm:$0xff]
    %v38 = vld [vmem:[#allocation2 + $0x28] sm:$0xff]
    %v39 = vld [vmem:[#allocation2 + $0x30] sm:$0xff]
    %v40 = vld [vmem:[#allocation2 + $0x38] sm:$0xff]
    %v41 = vld [vmem:[#allocation2 + $0x40] sm:$0xff]
    %v42 = vld [vmem:[#allocation2 + $0x48] sm:$0xff]
    %v43 = vld [vmem:[#allocation2 + $0x50] sm:$0xff]
    %v44 = vld [vmem:[#allocation2 + $0x58] sm:$0xff]
    %v45 = vld [vmem:[#allocation2 + $0x60] sm:$0xff]
    %v46 = vld [vmem:[#allocation2 + $0x68] sm:$0xff]
    %v47 = vld [vmem:[#allocation2 + $0x70] sm:$0xff]
    %v48 = vld [vmem:[#allocation2 + $0x78] sm:$0xff]
    %v49 = vmax.f32 %v33, 0.0
    %v50 = vmax.f32 %v34, 0.0
    %v51 = vmax.f32 %v35, 0.0
    %v52 = vmax.f32 %v36, 0.0
    %v53 = vmax.f32 %v37, 0.0
    %v54 = vmax.f32 %v38, 0.0
    %v55 = vmax.f32 %v39, 0.0
    %v56 = vmax.f32 %v40, 0.0
    %v57 = vmax.f32 %v41, 0.0
    %v58 = vmax.f32 %v42, 0.0
    %v59 = vmax.f32 %v43, 0.0
    %v60 = vmax.f32 %v44, 0.0
    %v61 = vmax.f32 %v45, 0.0
    %v62 = vmax.f32 %v46, 0.0
    %v63 = vmax.f32 %v47, 0.0
    %v64 = vmax.f32 %v48, 0.0
    %v65 = vld [vmem:[#allocation5] sm:$0x3]
    %v66 = vadd.f32 %v49, %v50
    %67 = vadd.xlane.f32.xlu0 %v66
    %v68 = vpop.xlane.xlu0 %67
    %v69 = vadd.f32 %v51, %v52
    %70 = vadd.xlane.f32.xlu0 %v69
    %v71 = vpop.xlane.xlu0 %70
    %v72 = vadd.f32 %v53, %v54
    %73 = vadd.xlane.f32.xlu0 %v72
    %v74 = vpop.xlane.xlu0 %73
    %v75 = vadd.f32 %v55, %v56
    %76 = vadd.xlane.f32.xlu0 %v75
    %v77 = vpop.xlane.xlu0 %76
    %v78 = vadd.f32 %v57, %v58
    %79 = vadd.xlane.f32.xlu0 %v78
    %v80 = vpop.xlane.xlu0 %79
    %v81 = vadd.f32 %v59, %v60
    %82 = vadd.xlane.f32.xlu0 %v81
    %v83 = vpop.xlane.xlu0 %82
    %v84 = vadd.f32 %v61, %v62
    %85 = vadd.xlane.f32.xlu0 %v84
    %v86 = vpop.xlane.xlu0 %85
    %v87 = vadd.f32 %v63, %v64
    %88 = vadd.xlane.f32.xlu0 %v87
    %v89 = vpop.xlane.xlu0 %88
    %v98 = vlaneseq
    %v99 = vand.u32 %v98, 127
    %v100 = vlaneseq
    %v101 = vshrl.u32 %v100, 7
    %v102 = vsub.s32 %v99, %v101
    %v103 = vrot.slane %v68, %v102
    %v104 = vadd.s32 %v99, 4294967288
    %v105 = vlaneseq
    %v106 = vshrl.u32 %v105, 7
    %v107 = vsub.s32 %v104, %v106
    %v108 = vrot.slane %v71, %v107
    %vm109 = vcmask 130112
    %v110 = vsel %vm109, %v108, %v103
    %v111 = vadd.s32 %v99, 4294967280
    %v112 = vlaneseq
    %v113 = vshrl.u32 %v112, 7
    %v114 = vsub.s32 %v111, %v113
    %v115 = vrot.slane %v74, %v114
    %vm116 = vcmask 195712
    %v117 = vsel %vm116, %v115, %v110
    %v118 = vadd.s32 %v99, 4294967272
    %v119 = vlaneseq
    %v120 = vshrl.u32 %v119, 7
    %v121 = vsub.s32 %v118, %v120
    %v122 = vrot.slane %v77, %v121
    %vm123 = vcmask 261312
    %v124 = vsel %vm123, %v122, %v117
    %v125 = vlaneseq
    %v126 = vshrl.u32 %v125, 7
    %v127 = vsub.s32 %v99, %v126
    %v128 = vrot.slane %v80, %v127
    %v129 = vlaneseq
    %v130 = vshrl.u32 %v129, 7
    %v131 = vsub.s32 %v104, %v130
    %v132 = vrot.slane %v83, %v131
    %v133 = vsel %vm109, %v132, %v128
    %v134 = vlaneseq
    %v135 = vshrl.u32 %v134, 7
    %v136 = vsub.s32 %v111, %v135
    %v137 = vrot.slane %v86, %v136
    %v138 = vsel %vm116, %v137, %v133
    %v139 = vlaneseq
    %v140 = vshrl.u32 %v139, 7
    %v141 = vsub.s32 %v118, %v140
    %v142 = vrot.slane %v89, %v141
    %v143 = vsel %vm123, %v142, %v138
    %vm144 = vcmask 1041409
    %v145 = vsel %vm144, %v143, %v124
    %v147 = vadd.f32 %v65, %v145
    %vm148 = vcmask 254976
    %149 = vst.msk [vmem:[#allocation5] sm:$0x3] %vm148, %v147
    %v150 = vld [vmem:[#allocation6] sm:$0x3]
    %v151 = vmax.f32 %v49, %v50
    %152 = vmax.xlane.f32.xlu0 %v151
    %v153 = vpop.xlane.xlu0 %152
    %v154 = vmax.f32 %v51, %v52
    %155 = vmax.xlane.f32.xlu0 %v154
    %v156 = vpop.xlane.xlu0 %155
    %v157 = vmax.f32 %v53, %v54
    %158 = vmax.xlane.f32.xlu0 %v157
    %v159 = vpop.xlane.xlu0 %158
    %v160 = vmax.f32 %v55, %v56
    %161 = vmax.xlane.f32.xlu0 %v160
    %v162 = vpop.xlane.xlu0 %161
    %v163 = vmax.f32 %v57, %v58
    %164 = vmax.xlane.f32.xlu0 %v163
    %v165 = vpop.xlane.xlu0 %164
    %v166 = vmax.f32 %v59, %v60
    %167 = vmax.xlane.f32.xlu0 %v166
    %v168 = vpop.xlane.xlu0 %167
    %v169 = vmax.f32 %v61, %v62
    %170 = vmax.xlane.f32.xlu0 %v169
    %v171 = vpop.xlane.xlu0 %170
    %v172 = vmax.f32 %v63, %v64
    %173 = vmax.xlane.f32.xlu0 %v172
    %v174 = vpop.xlane.xlu0 %173
    %v183 = vlaneseq
    %v184 = vshrl.u32 %v183, 7
    %v185 = vsub.s32 %v99, %v184
    %v186 = vrot.slane %v153, %v185
    %v187 = vlaneseq
    %v188 = vshrl.u32 %v187, 7
    %v189 = vsub.s32 %v104, %v188
    %v190 = vrot.slane %v156, %v189
    %v191 = vsel %vm109, %v190, %v186
    %v192 = vlaneseq
    %v193 = vshrl.u32 %v192, 7
    %v194 = vsub.s32 %v111, %v193
    %v195 = vrot.slane %v159, %v194
    %v196 = vsel %vm116, %v195, %v191
    %v197 = vlaneseq
    %v198 = vshrl.u32 %v197, 7
    %v199 = vsub.s32 %v118, %v198
    %v200 = vrot.slane %v162, %v199
    %v201 = vsel %vm123, %v200, %v196
    %v202 = vlaneseq
    %v203 = vshrl.u32 %v202, 7
    %v204 = vsub.s32 %v99, %v203
    %v205 = vrot.slane %v165, %v204
    %v206 = vlaneseq
    %v207 = vshrl.u32 %v206, 7
    %v208 = vsub.s32 %v104, %v207
    %v209 = vrot.slane %v168, %v208
    %v210 = vsel %vm109, %v209, %v205
    %v211 = vlaneseq
    %v212 = vshrl.u32 %v211, 7
    %v213 = vsub.s32 %v111, %v212
    %v214 = vrot.slane %v171, %v213
    %v215 = vsel %vm116, %v214, %v210
    %v216 = vlaneseq
    %v217 = vshrl.u32 %v216, 7
    %v218 = vsub.s32 %v118, %v217
    %v219 = vrot.slane %v174, %v218
    %v220 = vsel %vm123, %v219, %v215
    %v221 = vsel %vm144, %v220, %v201
    %v223 = vmax.f32 %v150, %v221
    %224 = vst.msk [vmem:[#allocation6] sm:$0x3] %vm148, %v223
    // Predicated region
    $region14: #{tpu_custom_call.1} parent=1 // pred_check
      _
    $region15: #{tpu_custom_call.1} parent=1 // pred_check_branch
      %226 = sbr.rel (0) target = $region17
    $region16: #{tpu_custom_call.1} parent=1 // pred_region
      %s228 = ssub.s32 32, 32
      %229 = vsyncadd [#allocation4], %s228
      %s231 = sshll.u32 [#allocation5], 4
      %s232 = int_to_ptr.vmem [resolvable:$true] %s231
      %234 = dma.vmem_to_hbm [thread:$0]  %s232, 32, %s1, [#allocation4]
    $region17: #{tpu_custom_call.1} parent=1 // pred_fallthru
      _
    // Predicated region
    $region18: #{tpu_custom_call.1} parent=1 // pred_check
      _
    $region19: #{tpu_custom_call.1} parent=1 // pred_check_branch
      %236 = sbr.rel (0) target = $region21
    $region20: #{tpu_custom_call.1} parent=1 // pred_region
      %s238 = ssub.s32 32, 32
      %239 = vsyncadd [#allocation7], %s238
      %s241 = sshll.u32 [#allocation6], 4
      %s242 = int_to_ptr.vmem [resolvable:$true] %s241
      %244 = dma.vmem_to_hbm [thread:$0]  %s242, 32, %s2, [#allocation7]
    $region21: #{tpu_custom_call.1} parent=1 // pred_fallthru
      _
    // Predicated region
    $region22: #{tpu_custom_call.1} parent=1 // pred_check
      _
    $region23: #{tpu_custom_call.1} parent=1 // pred_check_branch
      %246 = sbr.rel (0) target = $region25
    $region24: #{tpu_custom_call.1} parent=1 // pred_region
      %247 = dma.done [#allocation4], 32
    $region25: #{tpu_custom_call.1} parent=1 // pred_fallthru
      _
    // Predicated region
    $region26: #{tpu_custom_call.1} parent=1 // pred_check
      _
    $region27: #{tpu_custom_call.1} parent=1 // pred_check_branch
      %249 = sbr.rel (0) target = $region29
    $region28: #{tpu_custom_call.1} parent=1 // pred_region
      %250 = dma.done [#allocation7], 32
    $region29: #{tpu_custom_call.1} parent=1 // pred_fallthru
      _
    %251 = vsyncpa [#allocation3], 1
    %252 = vsyncpa [#allocation4], 1
    %253 = vsyncpa [#allocation7], 1

</llo_original>
